<compile_context>
chip_gen: v5e
topology: v5e:2x2
jax: 0.10.0
libtpu: 0.0.40
codegen_flags: <defaults>
</compile_context>

<pallas_src>
import functools

import jax
import jax.numpy as jnp
import numpy as np
from jax.experimental import pallas as pl
from jax.experimental.pallas import tpu as pltpu


def _round_up(a: int, m: int) -> int:
    return (a + m - 1) // m * m


def _mlp_kernel(x_ref, w1_ref, b1_ref, w2_ref, b2_ref, o_ref, *, softmax):
    mm_dtype = w1_ref.dtype                       # f32 (default) or bf16
    # dense1 on the MXU (f32 accumulation); optional bf16 cast rides the VPU.
    h = jnp.dot(x_ref[...].astype(mm_dtype), w1_ref[...],
                preferred_element_type=jnp.float32)
    h = jnp.maximum(h + b1_ref[...], 0.0)         # bias + ReLU in f32
    # dropout: nn.Identity() in the reference eval/default config (no-op).
    # dense2 on the MXU (f32 accumulation).
    y = jnp.dot(h.astype(mm_dtype), w2_ref[...],
                preferred_element_type=jnp.float32)
    y = y + b2_ref[...]
    if softmax:
        # nn.Softmax() with implicit dim -> last axis for 2D input.
        # (Lane packing is disabled on this path, so the full last axis is one
        #  softmax group.)  Exact divide, not approx reciprocal.
        m = jnp.max(y, axis=-1, keepdims=True)
        e = jnp.exp(y - m)
        y = e / jnp.sum(e, axis=-1, keepdims=True)
    o_ref[...] = y.astype(o_ref.dtype)


def pt_model_forward(x, w1, b1, w2, b2, *, softmax=False, use_bf16=False,
                     out_dtype=None, block_batch=None):
    """Pallas TPU forward pass of PtModel.

    x  : (B, n_features) float32
    w1 : (n_features, 20) float32   b1 : (20,) float32
    w2 : (20, n_labels)  float32    b2 : (n_labels,) float32
    """
    batch, n_features = x.shape
    hidden = w1.shape[1]
    n_labels = w2.shape[1]
    if out_dtype is None:
        out_dtype = x.dtype

    # ---- lane packing: p rows of x per 128-lane row (block-diagonal weights).
    # Disabled for the softmax path (the softmax group must stay the full last
    # axis) -- the review sanctions keeping the plain layout there.
    p = 1
    if (not softmax) and n_features < 128:
        p = max(1, 128 // n_features)
        while p > 1 and batch % p != 0:
            p -= 1

    if p > 1:
        eye = jnp.eye(p, dtype=w1.dtype)
        w1k = jnp.kron(eye, w1)                       # (p*F, p*H) block-diag
        w2k = jnp.kron(eye, w2)                       # (p*H, p*L) block-diag
        b1k = jnp.tile(b1, p).reshape(1, p * hidden)
        b2k = jnp.tile(b2, p).reshape(1, p * n_labels)
        x2d = x.reshape(batch // p, p * n_features)   # free row-major view
    else:
        w1k, w2k = w1, w2
        b1k = b1.reshape(1, hidden)
        b2k = b2.reshape(1, n_labels)
        x2d = x

    # Matmul operand dtype: weights (tiny, VMEM-resident) are cast in the
    # wrapper; x is cast *inside* the kernel (no extra HBM pass over x).
    mm_dtype = jnp.bfloat16 if use_bf16 else jnp.float32
    w1k = w1k.astype(mm_dtype)
    w2k = w2k.astype(mm_dtype)
    b1k = b1k.astype(jnp.float32)
    b2k = b2k.astype(jnp.float32)

    rows, in_lanes = x2d.shape
    hid_lanes = p * hidden
    out_lanes = p * n_labels

    # ---- batch tiling: big tiles (VMEM-budgeted) to amortize the ~0.35us
    # per-grid-step overhead; keep >= ~8 steps for big batches (v7x megacore).
    if block_batch is not None:
        tb = min(block_batch, rows)
    else:
        per_row_bytes = 4 * (_round_up(in_lanes, 128)
                             + _round_up(hid_lanes, 128)
                             + _round_up(out_lanes, 128))
        cap = max(512, min(8192, (12 << 20) // per_row_bytes // 8 * 8))
        if rows <= cap:
            tb = rows                                  # single full-extent tile
        else:
            tb = max(8, min(cap, _round_up(-(-rows // 8), 8)))
    grid = (pl.cdiv(rows, tb),)

    kernel = functools.partial(_mlp_kernel, softmax=softmax)

    out = pl.pallas_call(
        kernel,
        out_shape=jax.ShapeDtypeStruct((rows, out_lanes), out_dtype),
        grid_spec=pltpu.PrefetchScalarGridSpec(
            num_scalar_prefetch=0,
            grid=grid,
            in_specs=[
                # x streams tile-by-tile (double-buffered by Pallas)
                pl.BlockSpec((tb, in_lanes), lambda i: (i, 0)),
                # weights / biases: constant block index -> VMEM-resident
                pl.BlockSpec(w1k.shape, lambda i: (0, 0)),
                pl.BlockSpec(b1k.shape, lambda i: (0, 0)),
                pl.BlockSpec(w2k.shape, lambda i: (0, 0)),
                pl.BlockSpec(b2k.shape, lambda i: (0, 0)),
            ],
            out_specs=pl.BlockSpec((tb, out_lanes), lambda i: (i, 0)),
        ),
        compiler_params=pltpu.CompilerParams(
            dimension_semantics=("parallel",),     # shard batch tiles across TCs
            vmem_limit_bytes=48 * 1024 * 1024,     # > v5e default, < v7x 64 MiB
        ),
    )(x2d, w1k, b1k, w2k, b2k)

    # (rows, p*L) -> (B, L): free row-major reshape undoing the packing.
    return out.reshape(batch, n_labels)


def init_params(key, n_features, n_labels, hidden=20):
    """Deterministic init mimicking nn.Linear's Kaiming-uniform ranges."""
    k1, k2, k3, k4 = jax.random.split(key, 4)
    bound1 = 1.0 / float(np.sqrt(n_features))
    bound2 = 1.0 / float(np.sqrt(hidden))
    w1 = jax.random.uniform(k1, (n_features, hidden), jnp.float32, -bound1, bound1)
    b1 = jax.random.uniform(k2, (hidden,), jnp.float32, -bound1, bound1)
    w2 = jax.random.uniform(k3, (hidden, n_labels), jnp.float32, -bound2, bound2)
    b2 = jax.random.uniform(k4, (n_labels,), jnp.float32, -bound2, bound2)
    return w1, b1, w2, b2


if __name__ == "__main__":
    key = jax.random.PRNGKey(0)
    kx, kp = jax.random.split(key)

    batch, n_features, n_labels = 8, 32, 4
    x = jax.random.normal(kx, (batch, n_features), jnp.float32)
    w1, b1, w2, b2 = init_params(kp, n_features, n_labels)

    # Host-side float64 numpy reference (independent of TPU matmul precision).
    xn, w1n, b1n, w2n, b2n = (np.asarray(a, np.float64)
                              for a in (x, w1, b1, w2, b2))
    hn = np.maximum(xn @ w1n + b1n, 0.0)
    ref = hn @ w2n + b2n
    ref_e = np.exp(ref - ref.max(axis=-1, keepdims=True))
    ref_sm = ref_e / ref_e.sum(axis=-1, keepdims=True)

    # 1) default f32 matmul path (lane-packed, p=4 for F=32).
    out_f32 = pt_model_forward(x, w1, b1, w2, b2, softmax=False)
    jax.block_until_ready(out_f32)
    assert np.allclose(np.asarray(out_f32), ref, atol=2e-3, rtol=2e-3), "f32 mismatch"

    # 2) bf16 matmul path (in-kernel cast; looser tolerance).
    out_bf16 = pt_model_forward(x, w1, b1, w2, b2, softmax=False, use_bf16=True)
    jax.block_until_ready(out_bf16)
    assert np.allclose(np.asarray(out_bf16), ref, atol=3e-2, rtol=3e-2), "bf16 mismatch"

    # 3) softmax=True path (un-packed layout, exact divide).
    out_sm = pt_model_forward(x, w1, b1, w2, b2, softmax=True)
    jax.block_until_ready(out_sm)
    assert np.allclose(np.asarray(out_sm), ref_sm, atol=2e-3, rtol=2e-3), "softmax mismatch"

    print("KERNEL_OK")
</pallas_src>

<mosaic_0001>
module attributes {stable_mosaic.version = 11 : i64} {
  func.func @_mlp_kernel(%arg0: i32, %arg1: memref<2x128xf32, #tpu.memory_space<vmem>>, %arg2: memref<128x80xf32, #tpu.memory_space<vmem>>, %arg3: memref<1x80xf32, #tpu.memory_space<vmem>>, %arg4: memref<80x16xf32, #tpu.memory_space<vmem>>, %arg5: memref<1x16xf32, #tpu.memory_space<vmem>>, %arg6: memref<2x16xf32, #tpu.memory_space<vmem>>) attributes {dimension_semantics = [#tpu.dimension_semantics<parallel>], iteration_bounds = array<i64: 1>, scalar_prefetch = 0 : i64, scratch_operands = 0 : i64, tpu.core_type = #tpu.core_type<tc>, window_params = [{transform_indices = @transform_0, window_bounds = array<i64: 2, 128>}, {pipeline_mode = #tpu.pipeline_mode<synchronous>, transform_indices = @transform_1, window_bounds = array<i64: 128, 80>}, {pipeline_mode = #tpu.pipeline_mode<synchronous>, transform_indices = @transform_2, window_bounds = array<i64: 1, 80>}, {pipeline_mode = #tpu.pipeline_mode<synchronous>, transform_indices = @transform_3, window_bounds = array<i64: 80, 16>}, {pipeline_mode = #tpu.pipeline_mode<synchronous>, transform_indices = @transform_4, window_bounds = array<i64: 1, 16>}, {transform_indices = @transform_5, window_bounds = array<i64: 2, 16>}]} {
    %c0 = arith.constant 0 : index
    %c0_0 = arith.constant 0 : index
    %0 = vector.load %arg1[%c0, %c0_0] : memref<2x128xf32, #tpu.memory_space<vmem>>, vector<2x128xf32>
    %c0_1 = arith.constant 0 : index
    %c0_2 = arith.constant 0 : index
    %1 = vector.load %arg2[%c0_1, %c0_2] : memref<128x80xf32, #tpu.memory_space<vmem>>, vector<128x80xf32>
    %cst = arith.constant dense<0.000000e+00> : vector<2x80xf32>
    %2 = tpu.matmul %0, %1, %cst {dimension_numbers = #tpu.dot_dimension_numbers<[1], [0], [0], [1], [0, 0, 1, 1], [], []>} : vector<2x128xf32>, vector<128x80xf32>, vector<2x80xf32> -> vector<2x80xf32>
    %c0_3 = arith.constant 0 : index
    %c0_4 = arith.constant 0 : index
    %3 = vector.load %arg3[%c0_3, %c0_4] : memref<1x80xf32, #tpu.memory_space<vmem>>, vector<1x80xf32>
    %4 = vector.broadcast %3 : vector<1x80xf32> to vector<2x80xf32>
    %5 = arith.addf %2, %4 : vector<2x80xf32>
    %cst_5 = arith.constant 0.000000e+00 : f32
    %6 = vector.broadcast %cst_5 : f32 to vector<2x80xf32>
    %7 = arith.maximumf %5, %6 : vector<2x80xf32>
    %c0_6 = arith.constant 0 : index
    %c0_7 = arith.constant 0 : index
    %8 = vector.load %arg4[%c0_6, %c0_7] : memref<80x16xf32, #tpu.memory_space<vmem>>, vector<80x16xf32>
    %cst_8 = arith.constant dense<0.000000e+00> : vector<2x16xf32>
    %9 = tpu.matmul %7, %8, %cst_8 {dimension_numbers = #tpu.dot_dimension_numbers<[1], [0], [0], [1], [0, 0, 1, 1], [], []>} : vector<2x80xf32>, vector<80x16xf32>, vector<2x16xf32> -> vector<2x16xf32>
    %c0_9 = arith.constant 0 : index
    %c0_10 = arith.constant 0 : index
    %10 = vector.load %arg5[%c0_9, %c0_10] : memref<1x16xf32, #tpu.memory_space<vmem>>, vector<1x16xf32>
    %11 = vector.broadcast %10 : vector<1x16xf32> to vector<2x16xf32>
    %12 = arith.addf %9, %11 : vector<2x16xf32>
    %c0_11 = arith.constant 0 : index
    %c0_12 = arith.constant 0 : index
    %13 = vector.load %arg6[%c0_11, %c0_12] : memref<2x16xf32, #tpu.memory_space<vmem>>, vector<2x16xf32>
    tpu.vector_store %arg6[%c0_11, %c0_12], %12 {strides = array<i32>} : memref<2x16xf32, #tpu.memory_space<vmem>>, vector<2x16xf32>,
    return
  }
  func.func @transform_0(%arg0: i32) -> (i32, i32) {
    %c0_i32 = arith.constant 0 : i32
    %c0_i32_0 = arith.constant 0 : i32
    return %arg0, %c0_i32 : i32, i32
  }
  func.func @transform_1(%arg0: i32) -> (i32, i32) {
    %c0_i32 = arith.constant 0 : i32
    %c0_i32_0 = arith.constant 0 : i32
    %c0_i32_1 = arith.constant 0 : i32
    return %c0_i32, %c0_i32_0 : i32, i32
  }
  func.func @transform_2(%arg0: i32) -> (i32, i32) {
    %c0_i32 = arith.constant 0 : i32
    %c0_i32_0 = arith.constant 0 : i32
    %c0_i32_1 = arith.constant 0 : i32
    return %c0_i32, %c0_i32_0 : i32, i32
  }
  func.func @transform_3(%arg0: i32) -> (i32, i32) {
    %c0_i32 = arith.constant 0 : i32
    %c0_i32_0 = arith.constant 0 : i32
    %c0_i32_1 = arith.constant 0 : i32
    return %c0_i32, %c0_i32_0 : i32, i32
  }
  func.func @transform_4(%arg0: i32) -> (i32, i32) {
    %c0_i32 = arith.constant 0 : i32
    %c0_i32_0 = arith.constant 0 : i32
    %c0_i32_1 = arith.constant 0 : i32
    return %c0_i32, %c0_i32_0 : i32, i32
  }
  func.func @transform_5(%arg0: i32) -> (i32, i32) {
    %c0_i32 = arith.constant 0 : i32
    %c0_i32_0 = arith.constant 0 : i32
    return %arg0, %c0_i32 : i32, i32
  }
}

</mosaic_0001>

<llo_original>
// kernel: tpu_custom_call.1
$region0: #{tpu_custom_call.1}
  #allocation0 [shape = 'u32[]', space=smem, size = 0x4, offset = 0x4, fixed_abs, tag = 'smem constant byte address 0x4 - core index']
  #allocation1 [shape = 'u32[72,128]{1,0:T(1,128)}', space=vmem, size = 0x9000, scoped, tag = 'internal scratch']
  %s0 = inlined_call_operand.vmem [shape: f32[2,128], index: 0, kind: input, shape index: {}]
  %s1 = inlined_call_operand.vmem [shape: f32[128,80], index: 1, kind: input, shape index: {}]
  %s2 = inlined_call_operand.vmem [shape: f32[1,80], index: 2, kind: input, shape index: {}]
  %s3 = inlined_call_operand.vmem [shape: f32[80,16], index: 3, kind: input, shape index: {}]
  %s4 = inlined_call_operand.vmem [shape: f32[1,16], index: 4, kind: input, shape index: {}]
  %s5 = inlined_call_operand.hbm [shape: f32[2,16], index: 5, kind: output, shape index: {}]
  %s6 = sld [smem:[#allocation0]]
  $region30: #{tpu_custom_call.1} parent=0
    _
  %s8 = ssub.s32 1, %s6
  %s9 = scalar_select 0, %s8, %s6
  $region1: #{tpu_custom_call.1} parent=0
    #allocation2 [shape = 'u8[1024]{0}', space=vmem, size = 0x400, scoped, tag = 'output window, operand 0, single buffered']
    #allocation3 [shape = 's32[1]{0}', space=sflag, size = 0x4, scoped, tag = 'scoped memory for tpu_custom_call.1']
    %10 = vsyncpa [#allocation3], 0
    // Predicated region
    $region2: #{tpu_custom_call.1} parent=1 // pred_check
      _
    $region3: #{tpu_custom_call.1} parent=1 // pred_check_branch
      %12 = sbr.rel (0) target = $region5
    $region4: #{tpu_custom_call.1} parent=1 // pred_region
      _
    $region5: #{tpu_custom_call.1} parent=1 // pred_fallthru
      _
    // Predicated region
    $region6: #{tpu_custom_call.1} parent=1 // pred_check
      _
    $region7: #{tpu_custom_call.1} parent=1 // pred_check_branch
      %14 = sbr.rel (0) target = $region9
    $region8: #{tpu_custom_call.1} parent=1 // pred_region
      _
    $region9: #{tpu_custom_call.1} parent=1 // pred_fallthru
      _
    // Predicated region
    $region10: #{tpu_custom_call.1} parent=1 // pred_check
      _
    $region11: #{tpu_custom_call.1} parent=1 // pred_check_branch
      %16 = sbr.rel (0) target = $region13
    $region12: #{tpu_custom_call.1} parent=1 // pred_region
      _
    $region13: #{tpu_custom_call.1} parent=1 // pred_fallthru
      _
    // Predicated region
    $region14: #{tpu_custom_call.1} parent=1 // pred_check
      _
    $region15: #{tpu_custom_call.1} parent=1 // pred_check_branch
      %18 = sbr.rel (0) target = $region17
    $region16: #{tpu_custom_call.1} parent=1 // pred_region
      _
    $region17: #{tpu_custom_call.1} parent=1 // pred_fallthru
      _
    // Predicated region
    $region18: #{tpu_custom_call.1} parent=1 // pred_check
      _
    $region19: #{tpu_custom_call.1} parent=1 // pred_check_branch
      %20 = sbr.rel (0) target = $region21
    $region20: #{tpu_custom_call.1} parent=1 // pred_region
      _
    $region21: #{tpu_custom_call.1} parent=1 // pred_fallthru
      _
    %v21 = vld [vmem:[%s0] sm:$0x3]
    %v22 = vld [vmem:[%s1] sm:$0xff]
    %v23 = vld [vmem:[%s1 + $0x8] sm:$0xff]
    %v24 = vld [vmem:[%s1 + $0x10] sm:$0xff]
    %v25 = vld [vmem:[%s1 + $0x18] sm:$0xff]
    %v26 = vld [vmem:[%s1 + $0x20] sm:$0xff]
    %v27 = vld [vmem:[%s1 + $0x28] sm:$0xff]
    %v28 = vld [vmem:[%s1 + $0x30] sm:$0xff]
    %v29 = vld [vmem:[%s1 + $0x38] sm:$0xff]
    %v30 = vld [vmem:[%s1 + $0x40] sm:$0xff]
    %v31 = vld [vmem:[%s1 + $0x48] sm:$0xff]
    %v32 = vld [vmem:[%s1 + $0x50] sm:$0xff]
    %v33 = vld [vmem:[%s1 + $0x58] sm:$0xff]
    %v34 = vld [vmem:[%s1 + $0x60] sm:$0xff]
    %v35 = vld [vmem:[%s1 + $0x68] sm:$0xff]
    %v36 = vld [vmem:[%s1 + $0x70] sm:$0xff]
    %v37 = vld [vmem:[%s1 + $0x78] sm:$0xff]
    %v38 = vld [vmem:[%s2] sm:$0x1]
    %v40 = vperm.slane %v38, 0
    %42 = vmatpush.msra.mxu0 %v37
    %43 = vmatpush.msra.mxu0 %v36
    %44 = vmatpush.msra.mxu0 %v35
    %45 = vmatpush.msra.mxu0 %v34
    %46 = vmatpush.msra.mxu0 %v33
    %47 = vmatpush.msra.mxu0 %v32
    %48 = vmatpush.msra.mxu0 %v31
    %49 = vmatpush.msra.mxu0 %v30
    %50 = vmatpush.msra.mxu0 %v29
    %51 = vmatpush.msra.mxu0 %v28
    %52 = vmatpush.msra.mxu0 %v27
    %53 = vmatpush.msra.mxu0 %v26
    %54 = vmatpush.msra.mxu0 %v25
    %55 = vmatpush.msra.mxu0 %v24
    %56 = vmatpush.msra.mxu0 %v23
    %57 = vmatpush.msra.mxu0 %v22
    %58 = vmatmul.f32.gmra.mxu0 %v21
    %v59 = vpop.f32.mrf.mxu0
    %v60 = vadd.f32 %v40, %v59
    %61 = vdwg.mxu0
    %v62 = vmax.f32 %v60, 0.0
    %v63 = vld [vmem:[%s3] sm:$0xff]
    %v64 = vld [vmem:[%s3 + $0x8] sm:$0xff]
    %v65 = vld [vmem:[%s3 + $0x10] sm:$0xff]
    %v66 = vld [vmem:[%s3 + $0x18] sm:$0xff]
    %v67 = vld [vmem:[%s3 + $0x20] sm:$0xff]
    %v68 = vld [vmem:[%s3 + $0x28] sm:$0xff]
    %v69 = vld [vmem:[%s3 + $0x30] sm:$0xff]
    %v70 = vld [vmem:[%s3 + $0x38] sm:$0xff]
    %v71 = vld [vmem:[%s3 + $0x40] sm:$0xff]
    %v72 = vld [vmem:[%s3 + $0x48] sm:$0xff]
    %v73 = vld [vmem:[%s4] sm:$0x1]
    %v75 = vperm.slane %v73, 0
    %vm77 = vcmask 654336
    %v79 = vsel %vm77, %v62, 0
    %81 = vmatpush.msra.mxu0 0.0
    %82 = vmatpush.msra.mxu0 0.0
    %83 = vmatpush.msra.mxu0 0.0
    %84 = vmatpush.msra.mxu0 0.0
    %85 = vmatpush.msra.mxu0 0.0
    %86 = vmatpush.msra.mxu0 0.0
    %87 = vmatpush.msra.mxu0 %v72
    %88 = vmatpush.msra.mxu0 %v71
    %89 = vmatpush.msra.mxu0 %v70
    %90 = vmatpush.msra.mxu0 %v69
    %91 = vmatpush.msra.mxu0 %v68
    %92 = vmatpush.msra.mxu0 %v67
    %93 = vmatpush.msra.mxu0 %v66
    %94 = vmatpush.msra.mxu0 %v65
    %95 = vmatpush.msra.mxu0 %v64
    %96 = vmatpush.msra.mxu0 %v63
    %97 = vmatmul.f32.gmra.mxu0 %v79
    %v98 = vpop.f32.mrf.mxu0
    %v99 = vadd.f32 %v75, %v98
    %100 = vdwg.mxu0
    %vm101 = vcmask 123904
    %102 = vst.msk [vmem:[#allocation2] sm:$0x3] %vm101, %v99
    // Predicated region
    $region22: #{tpu_custom_call.1} parent=1 // pred_check
      _
    $region23: #{tpu_custom_call.1} parent=1 // pred_check_branch
      %104 = sbr.rel (0) target = $region25
    $region24: #{tpu_custom_call.1} parent=1 // pred_region
      %106 = vsyncadd [#allocation3], 0
      %s108 = sshll.u32 [#allocation2], 4
      %s109 = int_to_ptr.vmem [resolvable:$true] %s108
      %s110 = sshll.u32 %s5, 4
      %s111 = int_to_ptr.hbm [resolvable:$true] %s110
      %113 = dma.vmem_to_hbm [thread:$0]  %s109, 32, %s111, [#allocation3]
    $region25: #{tpu_custom_call.1} parent=1 // pred_fallthru
      _
    // Predicated region
    $region26: #{tpu_custom_call.1} parent=1 // pred_check
      _
    $region27: #{tpu_custom_call.1} parent=1 // pred_check_branch
      %115 = sbr.rel (0) target = $region29
    $region28: #{tpu_custom_call.1} parent=1 // pred_region
      %117 = dma.done [#allocation3], 32
    $region29: #{tpu_custom_call.1} parent=1 // pred_fallthru
      _
    %118 = vsyncpa [#allocation3], 1

</llo_original>
